<compile_context>
chip_gen: v5e
topology: v5e:2x2
jax: 0.10.0
libtpu: 0.0.40
codegen_flags: <defaults>
</compile_context>

<pallas_src>
import jax
import jax.numpy as jnp
from jax.experimental import pallas as pl
from jax.experimental.pallas import tpu as pltpu


def _round_up(n, m):
    return -(-n // m) * m


def qfunction_kernel(x_ref, w1_ref, b1_ref, gamma_ref, beta_ref,
                     w2_ref, b2_ref, w3_ref, b3_ref, q_ref):
    """Fused fc1 + LayerNorm + tanh + fc2 + ELU + fc3 for one batch tile."""
    # fc1 on the MXU: x tile cast bf16 in-register (x stays f32 in HBM),
    # f32 accumulation.
    x = x_ref[...].astype(w1_ref.dtype)
    h = jnp.dot(x, w1_ref[...], preferred_element_type=jnp.float32)
    h = h + b1_ref[...]                                   # (TM, H) f32

    # LayerNorm over the feature (lane) axis, eps = nn.LayerNorm default.
    # Two-pass centered variance (review: avoid E[h^2] - mu^2 cancellation).
    mu = jnp.mean(h, axis=-1, keepdims=True)
    d = h - mu
    var = jnp.mean(d * d, axis=-1, keepdims=True)
    hn = d * jax.lax.rsqrt(var + 1e-5)
    hn = hn * gamma_ref[...] + beta_ref[...]

    # tanh on the EUP, in f32.
    h1 = jnp.tanh(hn)

    # fc2 on the MXU (bf16 operands, f32 accumulation) + ELU (alpha = 1.0).
    h2 = jnp.dot(h1.astype(w2_ref.dtype), w2_ref[...],
                 preferred_element_type=jnp.float32)
    h2 = h2 + b2_ref[...]
    h2 = jnp.where(h2 > 0, h2, jnp.exp(h2) - 1.0)

    # fc3 (out_features = 1): contract features of w3 (1, H) against h2
    # (TM, H) with a transposed-RHS dot (the q.k^T attention pattern), so the
    # result is a lane-dense (1, TM) row -- no (TM, 1) column store.
    q_row = jax.lax.dot_general(
        w3_ref[...], h2.astype(w3_ref.dtype),
        (((1,), (1,)), ((), ())),
        preferred_element_type=jnp.float32)               # (1, TM)
    q_ref[...] = (q_row + b3_ref[0, 0]).astype(q_ref.dtype)


def qfunction_forward(x, params, *, block_b=512, compute_dtype=jnp.bfloat16):
    """Gridded Pallas call: batch tiled in rows, weights VMEM-resident.

    x: (B, latent_dim + action_dim) float32 (kept f32 in HBM; cast to bf16
    inside the kernel).  Returns q: (B, 1) float32.
    """
    B, din = x.shape
    H = params["w1"].shape[1]

    # Row tile (static Python):
    #  * multiple of 16 (bf16 sublane packing) where possible,
    #  * capped at block_b and at ~B/2 so large batches give the "parallel"
    #    grid axis >= 2 steps (v7x megacore sharding),
    #  * never larger than the batch (last block may still be partial; Pallas
    #    masks the boundary, rows are independent, tail is sliced off below).
    if B >= 8:
        tm = max(8, min(block_b, _round_up(pl.cdiv(B, 2), 16), (B // 8) * 8))
    else:
        tm = B                      # single full-extent block, no padding
    g = pl.cdiv(B, tm)

    # bf16 for the MXU operands (halves resident-weight VMEM + HBM traffic);
    # biases / LayerNorm params stay f32 (used on the f32 VPU path).
    w1 = params["w1"].astype(compute_dtype)
    w2 = params["w2"].astype(compute_dtype)
    w3 = params["w3"].reshape(1, H).astype(compute_dtype)   # (1, H) row
    b3 = params["b3"].reshape(1, 1).astype(jnp.float32)     # SMEM scalar
    inputs = (x, w1, params["b1"], params["gamma"], params["beta"],
              w2, params["b2"], w3, b3)

    def resident_spec(a):
        nd = a.ndim
        # Same block index every grid step -> no re-DMA, stays VMEM-resident.
        return pl.BlockSpec(a.shape, lambda i: (0,) * nd)

    in_specs = [pl.BlockSpec((tm, din), lambda i: (i, 0))]          # x tiles
    in_specs += [resident_spec(a) for a in inputs[1:-1]]            # weights
    in_specs += [pl.BlockSpec(memory_space=pltpu.MemorySpace.SMEM)]  # b3
    out_spec = pl.BlockSpec((1, tm), lambda i: (i, 0))              # q rows

    cost = pl.CostEstimate(
        flops=2 * B * (din * H + H * H + H),
        transcendentals=B * (2 * H + 1),
        bytes_accessed=int(x.size) * x.dtype.itemsize
        + sum(int(a.size) * a.dtype.itemsize for a in inputs[1:])
        + int(g * tm) * 4,
    )

    q_rows = pl.pallas_call(
        qfunction_kernel,
        out_shape=jax.ShapeDtypeStruct((g, tm), jnp.float32),
        grid=(g,),
        in_specs=in_specs,
        out_specs=out_spec,
        compiler_params=pltpu.CompilerParams(
            dimension_semantics=("parallel",)),
        cost_estimate=cost,
    )(*inputs)

    # (g, TM) lane-dense rows -> (B, 1) column; tail (out-of-range rows of the
    # last tile) dropped.
    return q_rows.reshape(g * tm)[:B].reshape(B, 1)


def init_params(key, latent_dim, action_dim, hidden_dim):
    """Deterministic synthetic parameters matching nn.Linear / nn.LayerNorm.

    Weights stored as (in_features, out_features) = PyTorch weight.T.
    """
    in_dim = latent_dim + action_dim
    k1, k2, k3, k4, k5, k6 = jax.random.split(key, 6)

    def uniform(k, shape, fan_in):
        bound = 1.0 / jnp.sqrt(fan_in)
        return jax.random.uniform(k, shape, jnp.float32, -bound, bound)

    return {
        "w1": uniform(k1, (in_dim, hidden_dim), in_dim),
        "b1": uniform(k2, (1, hidden_dim), in_dim),
        "w2": uniform(k3, (hidden_dim, hidden_dim), hidden_dim),
        "b2": uniform(k4, (1, hidden_dim), hidden_dim),
        "w3": uniform(k5, (hidden_dim, 1), hidden_dim),
        "b3": uniform(k6, (1, 1), hidden_dim),
        "gamma": jnp.ones((1, hidden_dim), jnp.float32),   # LayerNorm weight
        "beta": jnp.zeros((1, hidden_dim), jnp.float32),   # LayerNorm bias
    }


def reference_forward_f32(x, p):
    """Pure-f32 JAX reference matching the PyTorch module exactly."""
    h = x @ p["w1"] + p["b1"]
    mu = jnp.mean(h, axis=-1, keepdims=True)
    var = jnp.mean((h - mu) ** 2, axis=-1, keepdims=True)
    h = (h - mu) / jnp.sqrt(var + 1e-5) * p["gamma"] + p["beta"]
    h = jnp.tanh(h)
    h = h @ p["w2"] + p["b2"]
    h = jnp.where(h > 0, h, jnp.expm1(h))
    return h @ p["w3"] + p["b3"]


def reference_forward_matched(x, p, compute_dtype=jnp.bfloat16):
    """JAX reference with the same bf16-MXU / f32-elementwise casting plan."""
    w1 = p["w1"].astype(compute_dtype)
    w2 = p["w2"].astype(compute_dtype)
    w3 = p["w3"].astype(compute_dtype)
    h = jnp.dot(x.astype(compute_dtype), w1,
                preferred_element_type=jnp.float32) + p["b1"]
    mu = jnp.mean(h, axis=-1, keepdims=True)
    d = h - mu
    var = jnp.mean(d * d, axis=-1, keepdims=True)
    h = d * jax.lax.rsqrt(var + 1e-5) * p["gamma"] + p["beta"]
    h = jnp.tanh(h)
    h = jnp.dot(h.astype(compute_dtype), w2,
                preferred_element_type=jnp.float32) + p["b2"]
    h = jnp.where(h > 0, h, jnp.exp(h) - 1.0)
    q = jnp.dot(h.astype(compute_dtype), w3,
                preferred_element_type=jnp.float32)
    return q + p["b3"].reshape(1, 1)


if __name__ == "__main__":
    latent_dim, action_dim, hidden_dim = 24, 8, 32
    key = jax.random.PRNGKey(0)
    k_x, k_p, k_x2 = jax.random.split(key, 3)
    params = init_params(k_p, latent_dim, action_dim, hidden_dim)

    # Small batch (single exact tile, typical module call shape).
    x = jax.random.normal(k_x, (8, latent_dim + action_dim), jnp.float32)
    q = jax.block_until_ready(qfunction_forward(x, params))
    assert q.shape == (8, 1)
    assert jnp.allclose(q, reference_forward_matched(x, params),
                        atol=2e-3, rtol=2e-3), "mismatch vs matched reference"
    assert jnp.allclose(q, reference_forward_f32(x, params),
                        atol=3e-2, rtol=3e-2), "mismatch vs f32 reference"

    # Larger batch exercising the grid (2 tiles with a partial last block),
    # i.e. the "stack ensemble / time-steps into one call" path.
    x2 = jax.random.normal(k_x2, (200, latent_dim + action_dim), jnp.float32)
    q2 = jax.block_until_ready(qfunction_forward(x2, params))
    assert q2.shape == (200, 1)
    assert jnp.allclose(q2, reference_forward_matched(x2, params),
                        atol=2e-3, rtol=2e-3), "mismatch vs matched reference"
    assert jnp.allclose(q2, reference_forward_f32(x2, params),
                        atol=3e-2, rtol=3e-2), "mismatch vs f32 reference"

    print("KERNEL_OK")
</pallas_src>

<mosaic_0001>
module attributes {stable_mosaic.version = 11 : i64} {
  func.func @qfunction_kernel(%arg0: i32, %arg1: memref<8x32xf32, #tpu.memory_space<vmem>>, %arg2: memref<32x32xbf16, #tpu.memory_space<vmem>>, %arg3: memref<1x32xf32, #tpu.memory_space<vmem>>, %arg4: memref<1x32xf32, #tpu.memory_space<vmem>>, %arg5: memref<1x32xf32, #tpu.memory_space<vmem>>, %arg6: memref<32x32xbf16, #tpu.memory_space<vmem>>, %arg7: memref<1x32xf32, #tpu.memory_space<vmem>>, %arg8: memref<1x32xbf16, #tpu.memory_space<vmem>>, %arg9: memref<1x1xf32, #tpu.memory_space<smem>>, %arg10: memref<1x8xf32, #tpu.memory_space<vmem>>) attributes {dimension_semantics = [#tpu.dimension_semantics<parallel>], iteration_bounds = array<i64: 1>, scalar_prefetch = 0 : i64, scratch_operands = 0 : i64, tpu.core_type = #tpu.core_type<tc>, window_params = [{transform_indices = @transform_0, window_bounds = array<i64: 8, 32>}, {pipeline_mode = #tpu.pipeline_mode<synchronous>, transform_indices = @transform_1, window_bounds = array<i64: 32, 32>}, {pipeline_mode = #tpu.pipeline_mode<synchronous>, transform_indices = @transform_2, window_bounds = array<i64: 1, 32>}, {pipeline_mode = #tpu.pipeline_mode<synchronous>, transform_indices = @transform_3, window_bounds = array<i64: 1, 32>}, {pipeline_mode = #tpu.pipeline_mode<synchronous>, transform_indices = @transform_4, window_bounds = array<i64: 1, 32>}, {pipeline_mode = #tpu.pipeline_mode<synchronous>, transform_indices = @transform_5, window_bounds = array<i64: 32, 32>}, {pipeline_mode = #tpu.pipeline_mode<synchronous>, transform_indices = @transform_6, window_bounds = array<i64: 1, 32>}, {pipeline_mode = #tpu.pipeline_mode<synchronous>, transform_indices = @transform_7, window_bounds = array<i64: 1, 32>}, {transform_indices = @transform_8, window_bounds = array<i64: 1, 1>}, {transform_indices = @transform_9, window_bounds = array<i64: 1, 8>}]} {
    %c0 = arith.constant 0 : index
    %c0_0 = arith.constant 0 : index
    %0 = vector.load %arg1[%c0, %c0_0] : memref<8x32xf32, #tpu.memory_space<vmem>>, vector<8x32xf32>
    %1 = arith.truncf %0 : vector<8x32xf32> to vector<8x32xbf16>
    %c0_1 = arith.constant 0 : index
    %c0_2 = arith.constant 0 : index
    %2 = vector.load %arg2[%c0_1, %c0_2] : memref<32x32xbf16, #tpu.memory_space<vmem>>, vector<32x32xbf16>
    %cst = arith.constant dense<0.000000e+00> : vector<8x32xf32>
    %3 = tpu.matmul %1, %2, %cst {dimension_numbers = #tpu.dot_dimension_numbers<[1], [0], [0], [1], [0, 0, 1, 1], [], []>} : vector<8x32xbf16>, vector<32x32xbf16>, vector<8x32xf32> -> vector<8x32xf32>
    %c0_3 = arith.constant 0 : index
    %c0_4 = arith.constant 0 : index
    %4 = vector.load %arg3[%c0_3, %c0_4] : memref<1x32xf32, #tpu.memory_space<vmem>>, vector<1x32xf32>
    %5 = vector.broadcast %4 : vector<1x32xf32> to vector<8x32xf32>
    %6 = arith.addf %3, %5 : vector<8x32xf32>
    %cst_5 = arith.constant dense<0.000000e+00> : vector<8xf32>
    %7 = vector.multi_reduction <add>, %6, %cst_5 [1] : vector<8x32xf32> to vector<8xf32>
    %8 = vector.shape_cast %7 : vector<8xf32> to vector<8x1xf32>
    %cst_6 = arith.constant 3.200000e+01 : f32
    %9 = vector.broadcast %cst_6 : f32 to vector<8x1xf32>
    %10 = arith.divf %8, %9 : vector<8x1xf32>
    %11 = vector.broadcast %10 : vector<8x1xf32> to vector<8x32xf32>
    %12 = arith.subf %6, %11 : vector<8x32xf32>
    %13 = arith.mulf %12, %12 : vector<8x32xf32>
    %cst_7 = arith.constant dense<0.000000e+00> : vector<8xf32>
    %14 = vector.multi_reduction <add>, %13, %cst_7 [1] : vector<8x32xf32> to vector<8xf32>
    %15 = vector.shape_cast %14 : vector<8xf32> to vector<8x1xf32>
    %cst_8 = arith.constant 3.200000e+01 : f32
    %16 = vector.broadcast %cst_8 : f32 to vector<8x1xf32>
    %17 = arith.divf %15, %16 : vector<8x1xf32>
    %cst_9 = arith.constant 9.99999974E-6 : f32
    %18 = vector.broadcast %cst_9 : f32 to vector<8x1xf32>
    %19 = arith.addf %17, %18 : vector<8x1xf32>
    %20 = math.rsqrt %19 : vector<8x1xf32>
    %21 = vector.broadcast %20 : vector<8x1xf32> to vector<8x32xf32>
    %22 = arith.mulf %12, %21 : vector<8x32xf32>
    %c0_10 = arith.constant 0 : index
    %c0_11 = arith.constant 0 : index
    %23 = vector.load %arg4[%c0_10, %c0_11] : memref<1x32xf32, #tpu.memory_space<vmem>>, vector<1x32xf32>
    %24 = vector.broadcast %23 : vector<1x32xf32> to vector<8x32xf32>
    %25 = arith.mulf %22, %24 : vector<8x32xf32>
    %c0_12 = arith.constant 0 : index
    %c0_13 = arith.constant 0 : index
    %26 = vector.load %arg5[%c0_12, %c0_13] : memref<1x32xf32, #tpu.memory_space<vmem>>, vector<1x32xf32>
    %27 = vector.broadcast %26 : vector<1x32xf32> to vector<8x32xf32>
    %28 = arith.addf %25, %27 : vector<8x32xf32>
    %29 = math.tanh %28 : vector<8x32xf32>
    %30 = arith.truncf %29 : vector<8x32xf32> to vector<8x32xbf16>
    %c0_14 = arith.constant 0 : index
    %c0_15 = arith.constant 0 : index
    %31 = vector.load %arg6[%c0_14, %c0_15] : memref<32x32xbf16, #tpu.memory_space<vmem>>, vector<32x32xbf16>
    %cst_16 = arith.constant dense<0.000000e+00> : vector<8x32xf32>
    %32 = tpu.matmul %30, %31, %cst_16 {dimension_numbers = #tpu.dot_dimension_numbers<[1], [0], [0], [1], [0, 0, 1, 1], [], []>} : vector<8x32xbf16>, vector<32x32xbf16>, vector<8x32xf32> -> vector<8x32xf32>
    %c0_17 = arith.constant 0 : index
    %c0_18 = arith.constant 0 : index
    %33 = vector.load %arg7[%c0_17, %c0_18] : memref<1x32xf32, #tpu.memory_space<vmem>>, vector<1x32xf32>
    %34 = vector.broadcast %33 : vector<1x32xf32> to vector<8x32xf32>
    %35 = arith.addf %32, %34 : vector<8x32xf32>
    %cst_19 = arith.constant 0.000000e+00 : f32
    %36 = vector.broadcast %cst_19 : f32 to vector<8x32xf32>
    %37 = arith.cmpf ogt, %35, %36 : vector<8x32xf32>
    %38 = math.exp %35 : vector<8x32xf32>
    %cst_20 = arith.constant 1.000000e+00 : f32
    %39 = vector.broadcast %cst_20 : f32 to vector<8x32xf32>
    %40 = arith.subf %38, %39 : vector<8x32xf32>
    %41 = arith.select %37, %35, %40 : vector<8x32xi1>, vector<8x32xf32>
    %c0_21 = arith.constant 0 : index
    %c0_22 = arith.constant 0 : index
    %42 = vector.load %arg8[%c0_21, %c0_22] : memref<1x32xbf16, #tpu.memory_space<vmem>>, vector<1x32xbf16>
    %43 = arith.truncf %41 : vector<8x32xf32> to vector<8x32xbf16>
    %cst_23 = arith.constant dense<0.000000e+00> : vector<1x8xf32>
    %44 = tpu.matmul %42, %43, %cst_23 {dimension_numbers = #tpu.dot_dimension_numbers<[1], [1], [0], [0], [0, 0, 1, 0], [], []>} : vector<1x32xbf16>, vector<8x32xbf16>, vector<1x8xf32> -> vector<1x8xf32>
    %c0_24 = arith.constant 0 : index
    %c0_25 = arith.constant 0 : index
    %45 = memref.load %arg9[%c0_24, %c0_25] : memref<1x1xf32, #tpu.memory_space<smem>>
    %46 = vector.broadcast %45 : f32 to vector<1x8xf32>
    %47 = arith.addf %44, %46 : vector<1x8xf32>
    %c0_26 = arith.constant 0 : index
    %c0_27 = arith.constant 0 : index
    %48 = vector.load %arg10[%c0_26, %c0_27] : memref<1x8xf32, #tpu.memory_space<vmem>>, vector<1x8xf32>
    tpu.vector_store %arg10[%c0_26, %c0_27], %47 {strides = array<i32>} : memref<1x8xf32, #tpu.memory_space<vmem>>, vector<1x8xf32>,
    return
  }
  func.func @transform_0(%arg0: i32) -> (i32, i32) {
    %c0_i32 = arith.constant 0 : i32
    %c0_i32_0 = arith.constant 0 : i32
    return %arg0, %c0_i32 : i32, i32
  }
  func.func @transform_1(%arg0: i32) -> (i32, i32) {
    %c0_i32 = arith.constant 0 : i32
    %c0_i32_0 = arith.constant 0 : i32
    %c0_i32_1 = arith.constant 0 : i32
    return %c0_i32, %c0_i32_0 : i32, i32
  }
  func.func @transform_2(%arg0: i32) -> (i32, i32) {
    %c0_i32 = arith.constant 0 : i32
    %c0_i32_0 = arith.constant 0 : i32
    %c0_i32_1 = arith.constant 0 : i32
    return %c0_i32, %c0_i32_0 : i32, i32
  }
  func.func @transform_3(%arg0: i32) -> (i32, i32) {
    %c0_i32 = arith.constant 0 : i32
    %c0_i32_0 = arith.constant 0 : i32
    %c0_i32_1 = arith.constant 0 : i32
    return %c0_i32, %c0_i32_0 : i32, i32
  }
  func.func @transform_4(%arg0: i32) -> (i32, i32) {
    %c0_i32 = arith.constant 0 : i32
    %c0_i32_0 = arith.constant 0 : i32
    %c0_i32_1 = arith.constant 0 : i32
    return %c0_i32, %c0_i32_0 : i32, i32
  }
  func.func @transform_5(%arg0: i32) -> (i32, i32) {
    %c0_i32 = arith.constant 0 : i32
    %c0_i32_0 = arith.constant 0 : i32
    %c0_i32_1 = arith.constant 0 : i32
    return %c0_i32, %c0_i32_0 : i32, i32
  }
  func.func @transform_6(%arg0: i32) -> (i32, i32) {
    %c0_i32 = arith.constant 0 : i32
    %c0_i32_0 = arith.constant 0 : i32
    %c0_i32_1 = arith.constant 0 : i32
    return %c0_i32, %c0_i32_0 : i32, i32
  }
  func.func @transform_7(%arg0: i32) -> (i32, i32) {
    %c0_i32 = arith.constant 0 : i32
    %c0_i32_0 = arith.constant 0 : i32
    %c0_i32_1 = arith.constant 0 : i32
    return %c0_i32, %c0_i32_0 : i32, i32
  }
  func.func @transform_8(%arg0: i32) -> (i32, i32) {
    %c0_i32 = arith.constant 0 : i32
    %c0_i32_0 = arith.constant 0 : i32
    %c0_i32_1 = arith.constant 0 : i32
    return %c0_i32, %c0_i32_0 : i32, i32
  }
  func.func @transform_9(%arg0: i32) -> (i32, i32) {
    %c0_i32 = arith.constant 0 : i32
    %c0_i32_0 = arith.constant 0 : i32
    return %arg0, %c0_i32 : i32, i32
  }
}

</mosaic_0001>

<llo_original>
// kernel: tpu_custom_call.1
$region0: #{tpu_custom_call.1}
  #allocation0 [shape = 'u32[]', space=smem, size = 0x4, offset = 0x4, fixed_abs, tag = 'smem constant byte address 0x4 - core index']
  #allocation1 [shape = 'u32[72,128]{1,0:T(1,128)}', space=vmem, size = 0x9000, scoped, tag = 'internal scratch']
  #allocation2 [shape = 'f32[1,1]{1,0:T(1,128)S(6)}', space=smem, size = 0x200, scoped, tag = 'scoped memory for tpu_custom_call.1']
  %s0 = inlined_call_operand.hbm [shape: f32[8,32], index: 0, kind: input, shape index: {}]
  %s1 = inlined_call_operand.hbm [shape: bf16[32,32], index: 1, kind: input, shape index: {}]
  %s2 = inlined_call_operand.vmem [shape: f32[1,32], index: 2, kind: input, shape index: {}]
  %s3 = inlined_call_operand.vmem [shape: f32[1,32], index: 3, kind: input, shape index: {}]
  %s4 = inlined_call_operand.vmem [shape: f32[1,32], index: 4, kind: input, shape index: {}]
  %s5 = inlined_call_operand.hbm [shape: bf16[32,32], index: 5, kind: input, shape index: {}]
  %s6 = inlined_call_operand.vmem [shape: f32[1,32], index: 6, kind: input, shape index: {}]
  %s7 = inlined_call_operand.vmem [shape: bf16[1,32], index: 7, kind: input, shape index: {}]
  %s8 = inlined_call_operand.<no memory space> [shape: f32[1,1], index: 8, kind: input, shape index: {}]
  %s9 = inlined_call_operand.hbm [shape: f32[1,8], index: 9, kind: output, shape index: {}]
  %s10 = sld [smem:[#allocation0]]
  $region58: #{tpu_custom_call.1} parent=0
    _
  %s12 = ssub.s32 1, %s10
  %s13 = scalar_select 0, %s12, %s10
  %14 = sst [smem:[#allocation2]] %s8
  $region1: #{tpu_custom_call.1} parent=0
    #allocation3 [shape = 'u8[4096]{0}', space=vmem, size = 0x1000, scoped, tag = 'input window, operand 0, single buffered']
    #allocation4 [shape = 's32[1]{0}', space=sflag, size = 0x4, scoped, tag = 'scoped memory for tpu_custom_call.1']
    #allocation5 [shape = 's32[1]{0}', space=sflag, size = 0x4, scoped, tag = 'scoped memory for tpu_custom_call.1']
    #allocation6 [shape = 'u8[8192]{0}', space=vmem, size = 0x2000, scoped, tag = 'input window, operand 1, single buffered']
    #allocation7 [shape = 's32[1]{0}', space=sflag, size = 0x4, scoped, tag = 'scoped memory for tpu_custom_call.1']
    #allocation8 [shape = 'u8[8192]{0}', space=vmem, size = 0x2000, scoped, tag = 'input window, operand 5, single buffered']
    #allocation9 [shape = 'u8[512]{0}', space=vmem, size = 0x400, scoped, tag = 'output window, operand 0, single buffered']
    %15 = vsyncpa [#allocation4], 0
    %16 = vsyncpa [#allocation7], 0
    %17 = vsyncpa [#allocation5], 0
    // Predicated region
    $region2: #{tpu_custom_call.1} parent=1 // pred_check
      _
    $region3: #{tpu_custom_call.1} parent=1 // pred_check_branch
      %19 = sbr.rel (0) target = $region5
    $region4: #{tpu_custom_call.1} parent=1 // pred_region
      %21 = vsyncadd [#allocation4], 0
      %s23 = sshll.u32 %s0, 4
      %s24 = int_to_ptr.hbm [resolvable:$true] %s23
      %s25 = sshll.u32 [#allocation3], 4
      %s26 = int_to_ptr.vmem [resolvable:$true] %s25
      %28 = dma.hbm_to_vmem [thread:$0]  %s24, 128, %s26, [#allocation4]
    $region5: #{tpu_custom_call.1} parent=1 // pred_fallthru
      _
    // Predicated region
    $region6: #{tpu_custom_call.1} parent=1 // pred_check
      _
    $region7: #{tpu_custom_call.1} parent=1 // pred_check_branch
      %30 = sbr.rel (0) target = $region9
    $region8: #{tpu_custom_call.1} parent=1 // pred_region
      %32 = vsyncadd [#allocation7], 0
      %s33 = sshll.u32 %s1, 4
      %s34 = int_to_ptr.hbm [resolvable:$true] %s33
      %s35 = sshll.u32 [#allocation6], 4
      %s36 = int_to_ptr.vmem [resolvable:$true] %s35
      %41 = dma.hbm_to_vmem [thread:$0]  %s34, 256, %s36, [#allocation7], 64, 64, 4
    $region9: #{tpu_custom_call.1} parent=1 // pred_fallthru
      _
    // Predicated region
    $region10: #{tpu_custom_call.1} parent=1 // pred_check
      _
    $region11: #{tpu_custom_call.1} parent=1 // pred_check_branch
      %43 = sbr.rel (0) target = $region13
    $region12: #{tpu_custom_call.1} parent=1 // pred_region
      _
    $region13: #{tpu_custom_call.1} parent=1 // pred_fallthru
      _
    // Predicated region
    $region14: #{tpu_custom_call.1} parent=1 // pred_check
      _
    $region15: #{tpu_custom_call.1} parent=1 // pred_check_branch
      %45 = sbr.rel (0) target = $region17
    $region16: #{tpu_custom_call.1} parent=1 // pred_region
      _
    $region17: #{tpu_custom_call.1} parent=1 // pred_fallthru
      _
    // Predicated region
    $region18: #{tpu_custom_call.1} parent=1 // pred_check
      _
    $region19: #{tpu_custom_call.1} parent=1 // pred_check_branch
      %47 = sbr.rel (0) target = $region21
    $region20: #{tpu_custom_call.1} parent=1 // pred_region
      _
    $region21: #{tpu_custom_call.1} parent=1 // pred_fallthru
      _
    // Predicated region
    $region22: #{tpu_custom_call.1} parent=1 // pred_check
      _
    $region23: #{tpu_custom_call.1} parent=1 // pred_check_branch
      %49 = sbr.rel (0) target = $region25
    $region24: #{tpu_custom_call.1} parent=1 // pred_region
      %51 = vsyncadd [#allocation7], 0
      %s52 = sshll.u32 %s5, 4
      %s53 = int_to_ptr.hbm [resolvable:$true] %s52
      %s54 = sshll.u32 [#allocation8], 4
      %s55 = int_to_ptr.vmem [resolvable:$true] %s54
      %60 = dma.hbm_to_vmem [thread:$0]  %s53, 256, %s55, [#allocation7], 64, 64, 4
    $region25: #{tpu_custom_call.1} parent=1 // pred_fallthru
      _
    // Predicated region
    $region26: #{tpu_custom_call.1} parent=1 // pred_check
      _
    $region27: #{tpu_custom_call.1} parent=1 // pred_check_branch
      %62 = sbr.rel (0) target = $region29
    $region28: #{tpu_custom_call.1} parent=1 // pred_region
      _
    $region29: #{tpu_custom_call.1} parent=1 // pred_fallthru
      _
    // Predicated region
    $region30: #{tpu_custom_call.1} parent=1 // pred_check
      _
    $region31: #{tpu_custom_call.1} parent=1 // pred_check_branch
      %64 = sbr.rel (0) target = $region33
    $region32: #{tpu_custom_call.1} parent=1 // pred_region
      _
    $region33: #{tpu_custom_call.1} parent=1 // pred_fallthru
      _
    // Predicated region
    $region34: #{tpu_custom_call.1} parent=1 // pred_check
      _
    $region35: #{tpu_custom_call.1} parent=1 // pred_check_branch
      %66 = sbr.rel (0) target = $region37
    $region36: #{tpu_custom_call.1} parent=1 // pred_region
      _
    $region37: #{tpu_custom_call.1} parent=1 // pred_fallthru
      _
    // Predicated region
    $region38: #{tpu_custom_call.1} parent=1 // pred_check
      _
    $region39: #{tpu_custom_call.1} parent=1 // pred_check_branch
      %68 = sbr.rel (0) target = $region41
    $region40: #{tpu_custom_call.1} parent=1 // pred_region
      %70 = dma.done [#allocation4], 128
    $region41: #{tpu_custom_call.1} parent=1 // pred_fallthru
      _
    // Predicated region
    $region42: #{tpu_custom_call.1} parent=1 // pred_check
      _
    $region43: #{tpu_custom_call.1} parent=1 // pred_check_branch
      %72 = sbr.rel (0) target = $region45
    $region44: #{tpu_custom_call.1} parent=1 // pred_region
      %74 = dma.done [#allocation7], 256
    $region45: #{tpu_custom_call.1} parent=1 // pred_fallthru
      _
    // Predicated region
    $region46: #{tpu_custom_call.1} parent=1 // pred_check
      _
    $region47: #{tpu_custom_call.1} parent=1 // pred_check_branch
      %76 = sbr.rel (0) target = $region49
    $region48: #{tpu_custom_call.1} parent=1 // pred_region
      %78 = dma.done [#allocation7], 256
    $region49: #{tpu_custom_call.1} parent=1 // pred_fallthru
      _
    %v80 = vld [vmem:[#allocation3] sm:$0xff]
    %v81 = vpack.c.bf16 %v80, %v80
    %v82 = vld [vmem:[#allocation6] sm:$0xf]
    %v83 = vld [vmem:[#allocation6 + $0x4] sm:$0xf]
    %v84 = vld [vmem:[#allocation6 + $0x8] sm:$0xf]
    %v85 = vld [vmem:[#allocation6 + $0xc] sm:$0xf]
    %v86 = vld [vmem:[%s2] sm:$0x1]
    %v88 = vperm.slane %v86, 0
    %v94 = vunpack.c.l.b16 %v82
    %v95 = vunpack.c.l.b16 %v83
    %v96 = vunpack.c.l.b16 %v84
    %v97 = vunpack.c.l.b16 %v85
    %v98 = vpack.c.b16 %v95, %v94
    %v99 = vpack.c.b16 %v97, %v96
    %vm102 = vcmask 261120
    %v104 = vsel %vm102, %v81, 0
    %106 = vmatpush.bf16.msra.mxu0 0
    %107 = vmatpush.bf16.msra.mxu0 0
    %108 = vmatpush.bf16.msra.mxu0 0
    %109 = vmatpush.bf16.msra.mxu0 0
    %110 = vmatpush.bf16.msra.mxu0 0
    %111 = vmatpush.bf16.msra.mxu0 0
    %112 = vmatpush.bf16.msra.mxu0 %v99
    %113 = vmatpush.bf16.msra.mxu0 %v98
    %114 = vmatmul.bf16.gmra.mxu0 %v104
    %v115 = vpop.f32.mrf.mxu0
    %v116 = vadd.f32 %v88, %v115
    %v117 = vpop.f32.mrf.mxu0
    %118 = vdwg.mxu0
    %v119 = vsel %vm102, %v116, 0.0
    %120 = vadd.xlane.f32.xlu0 %v119
    %v121 = vpop.xlane.xlu0 %120
    %v122 = vrcp.pop 32.0
    %v123 = vmul.f32 32.0, %v122
    %v124 = vsub.f32 1.0, %v123
    %v125 = vmul.f32 %v122, %v124
    %v126 = vadd.f32 %v122, %v125
    %vm127 = vweird.f32 %v122
    %v128 = vsel %vm127, %v122, %v126
    %v129 = vmul.f32 %v121, %v128
    %v130 = vsub.f32 %v116, %v129
    %v131 = vmul.f32 %v130, %v130
    %v132 = vsel %vm102, %v131, 0.0
    %133 = vadd.xlane.f32.xlu0 %v132
    %v134 = vpop.xlane.xlu0 %133
    %v135 = vmul.f32 %v134, %v128
    %v136 = vadd.f32 %v135, 1e-05
    %v137 = vrsqrt.pop %v136
    %v138 = vmul.f32 %v137, %v136
    %v139 = vmul.f32 %v138, %v137
    %v140 = vmul.f32 0.5, %v139
    %v141 = vsub.f32 1.5, %v140
    %v142 = vmul.f32 %v137, %v141
    %vm143 = vweird.f32 %v136
    %vm144 = vweird.f32 %v137
    %vm145 = vmor %vm143, %vm144
    %v146 = vsel %vm145, %v137, %v142
    %v147 = vmul.f32 %v130, %v146
    %v148 = vld [vmem:[%s3] sm:$0x1]
    %v150 = vperm.slane %v148, 0
    %v152 = vmul.f32 %v147, %v150
    %v153 = vld [vmem:[%s4] sm:$0x1]
    %v155 = vperm.slane %v153, 0
    %v157 = vadd.f32 %v152, %v155
    %v158 = vtanh.pop %v157
    %v159 = vpack.c.bf16 %v158, %v158
    %v160 = vld [vmem:[#allocation8] sm:$0xf]
    %v161 = vld [vmem:[#allocation8 + $0x4] sm:$0xf]
    %v162 = vld [vmem:[#allocation8 + $0x8] sm:$0xf]
    %v163 = vld [vmem:[#allocation8 + $0xc] sm:$0xf]
    %v164 = vld [vmem:[%s6] sm:$0x1]
    %v166 = vperm.slane %v164, 0
    %v172 = vunpack.c.l.b16 %v160
    %v173 = vunpack.c.l.b16 %v161
    %v174 = vunpack.c.l.b16 %v162
    %v175 = vunpack.c.l.b16 %v163
    %v176 = vpack.c.b16 %v173, %v172
    %v177 = vpack.c.b16 %v175, %v174
    %v181 = vsel %vm102, %v159, 0
    %183 = vmatpush.bf16.msra.mxu0 0
    %184 = vmatpush.bf16.msra.mxu0 0
    %185 = vmatpush.bf16.msra.mxu0 0
    %186 = vmatpush.bf16.msra.mxu0 0
    %187 = vmatpush.bf16.msra.mxu0 0
    %188 = vmatpush.bf16.msra.mxu0 0
    %189 = vmatpush.bf16.msra.mxu0 %v177
    %190 = vmatpush.bf16.msra.mxu0 %v176
    %191 = vmatmul.bf16.gmra.mxu0 %v181
    %v192 = vpop.f32.mrf.mxu0
    %v193 = vadd.f32 %v166, %v192
    %v194 = vpop.f32.mrf.mxu0
    %195 = vdwg.mxu0
    %vm196 = vcmp.gt.f32.partialorder %v193, 0.0
    %v197 = vmul.f32 %v193, 1.442695
    %v198 = vpow.pop %v197
    %v199 = vsub.f32 %v198, 1.0
    %v200 = vsel %vm196, %v193, %v199
    %v201 = vld [vmem:[%s7] sm:$0x1]
    %v202 = vpack.c.bf16 %v200, %v200
    %s203 = sld [smem:[#allocation2]]
    %v204 = vstv %s203
    %v206 = vsel %vm102, %v201, 0
    %v209 = vsel %vm102, %v202, 0
    %211 = vmatpush.bf16.xpose.msra.mxu0 0
    %212 = vmatpush.bf16.xpose.msra.mxu0 0
    %213 = vmatpush.bf16.xpose.msra.mxu0 0
    %214 = vmatpush.bf16.xpose.msra.mxu0 0
    %215 = vmatpush.bf16.xpose.msra.mxu0 0
    %216 = vmatpush.bf16.xpose.msra.mxu0 0
    %217 = vmatpush.bf16.xpose.msra.mxu0 0
    %218 = vmatpush.bf16.xpose.msra.mxu0 %v209
    %219 = vmatmul.bf16.gmra.mxu0 %v206
    %v220 = vpop.f32.mrf.mxu0
    %v221 = vadd.f32 %v204, %v220
    %v222 = vpop.f32.mrf.mxu0
    %223 = vdwg.mxu0
    %vm224 = vcmask 57344
    %225 = vst.msk [vmem:[#allocation9] sm:$0x1] %vm224, %v221
    // Predicated region
    $region50: #{tpu_custom_call.1} parent=1 // pred_check
      _
    $region51: #{tpu_custom_call.1} parent=1 // pred_check_branch
      %227 = sbr.rel (0) target = $region53
    $region52: #{tpu_custom_call.1} parent=1 // pred_region
      %229 = vsyncadd [#allocation5], 0
      %s231 = sshll.u32 [#allocation9], 4
      %s232 = int_to_ptr.vmem [resolvable:$true] %s231
      %s233 = sshll.u32 %s9, 4
      %s234 = int_to_ptr.hbm [resolvable:$true] %s233
      %236 = dma.vmem_to_hbm [thread:$0]  %s232, 16, %s234, [#allocation5]
    $region53: #{tpu_custom_call.1} parent=1 // pred_fallthru
      _
    // Predicated region
    $region54: #{tpu_custom_call.1} parent=1 // pred_check
      _
    $region55: #{tpu_custom_call.1} parent=1 // pred_check_branch
      %238 = sbr.rel (0) target = $region57
    $region56: #{tpu_custom_call.1} parent=1 // pred_region
      %240 = dma.done [#allocation5], 16
    $region57: #{tpu_custom_call.1} parent=1 // pred_fallthru
      _
    %241 = vsyncpa [#allocation4], 1
    %242 = vsyncpa [#allocation7], 1
    %243 = vsyncpa [#allocation5], 1

</llo_original>
